<compile_context>
chip_gen: v7x
topology: tpu7x:2x2x1
jax: 0.10.0
libtpu: 0.0.40
codegen_flags: <defaults>
</compile_context>

<pallas_src>
import jax
import jax.numpy as jnp
from jax.experimental import pallas as pl
from jax.experimental.pallas import tpu as pltpu


def _maxpool2x2_kernel(x_ref, o_ref):
    # x_ref: (tr, 2, Wout, 2*C)  laid out as [row, dh, wo, dw*C + c]
    # o_ref: (tr, Wout, C)
    c = o_ref.shape[-1]
    top = x_ref[:, 0, :, :]                      # rows 2*ho     : (tr, Wout, 2C)
    bot = x_ref[:, 1, :, :]                      # rows 2*ho + 1 : (tr, Wout, 2C)
    hmax = jnp.maximum(top, bot)                 # reduce over dh (VPU, elementwise)
    # dw reduce: two contiguous lane slices of the 2C lane dim -> elementwise max.
    # TODO(synk): for C < 128 the store below is lane-masked; a flattened
    # (rows, Wout*C) out_spec would be lane-dense but needs an in-kernel
    # minor-dim merge (relayout) -- left out to keep lowering robust.
    o_ref[...] = jnp.maximum(hmax[..., :c], hmax[..., c:])


def _pad2(sub, lane):
    """Elements of a (sub, lane) tile after (8, 128) layout padding."""
    return (-(-sub // 8) * 8) * (-(-lane // 128) * 128)


def _vmem_policy():
    """(per-block VMEM budget bytes, vmem_limit_bytes) for this TPU generation."""
    mib = 1024 * 1024
    try:
        cap = getattr(pltpu.get_tpu_info(), "vmem_capacity_bytes", None)
    except Exception:      # conservative fallback if the query is unavailable
        cap = None
    if cap is None:
        return 8 * mib, 32 * mib            # safe on every generation
    if cap >= 100 * mib:                    # v5e / v6e: 128 MiB physical VMEM
        return 24 * mib, 64 * mib
    return 12 * mib, 48 * mib               # v7x: 64 MiB per TensorCore


def _pick_row_tile(rows, bytes_per_row, budget_bytes):
    """Largest row tile under the VMEM budget; prefers an even step count."""
    def _round8(t):
        return t - (t % 8) if t >= 8 else t

    tr = _round8(max(1, min(rows, budget_bytes // max(bytes_per_row, 1))))
    steps = -(-rows // tr)
    # v7x megacore: a multi-step "parallel" grid is split across 2 TensorCores,
    # so prefer an even number of steps when we have more than one.
    if steps > 1 and steps % 2 == 1:
        tr_even = _round8(max(1, -(-rows // (steps + 1))))
        if (-(-rows // tr_even)) % 2 == 0:
            tr = tr_even
    return tr


def _maxpool2x2_nhwc(x_nhwc):
    """2x2 / stride-2 max pool on an NHWC array. No layout transposes."""
    n, h, w, c = x_nhwc.shape
    hout, wout = h // 2, w // 2
    if n == 0 or hout == 0 or wout == 0 or c == 0:
        return jnp.zeros((n, hout, wout, c), x_nhwc.dtype)

    # Floor mode (ceil_mode=False): drop a trailing odd row / column.
    x_nhwc = x_nhwc[:, : hout * 2, : wout * 2, :]

    # Free, contiguous reshape exposing the 2x2 window and folding batch into
    # the pooled-row axis:
    #   x_blocks[b*hout + ho, dh, wo, dw*C + ci] == x[b, 2*ho+dh, 2*wo+dw, ci].
    rows = n * hout
    x_blocks = x_nhwc.reshape(rows, 2, wout, 2 * c)

    itemsize = jnp.dtype(x_nhwc.dtype).itemsize
    budget, vmem_limit = _vmem_policy()
    # Per tile row (with (8,128) padding): 2 input (wout, 2C) tiles + 1 output
    # (wout, C) tile.  Double buffering fits because budget <= vmem_limit / 2.
    bytes_per_row = (2 * _pad2(wout, 2 * c) + _pad2(wout, c)) * itemsize
    tr = _pick_row_tile(rows, bytes_per_row, budget)

    out_flat = pl.pallas_call(
        _maxpool2x2_kernel,
        out_shape=jax.ShapeDtypeStruct((rows, wout, c), x_nhwc.dtype),
        grid_spec=pltpu.PrefetchScalarGridSpec(
            num_scalar_prefetch=0,
            grid=(pl.cdiv(rows, tr),),
            in_specs=[pl.BlockSpec((tr, 2, wout, 2 * c), lambda r: (r, 0, 0, 0))],
            out_specs=pl.BlockSpec((tr, wout, c), lambda r: (r, 0, 0)),
        ),
        compiler_params=pltpu.CompilerParams(
            dimension_semantics=("parallel",),
            vmem_limit_bytes=vmem_limit,
        ),
    )(x_blocks)

    return out_flat.reshape(n, hout, wout, c)


@jax.jit
def downsample_forward_nhwc(x_nhwc):
    """MaxPool2d(2, 2) for models kept NHWC end-to-end (zero transposes)."""
    return _maxpool2x2_nhwc(x_nhwc)


@jax.jit
def downsample_forward(x_nchw):
    """Drop-in for the PyTorch DownSample module: NCHW in, NCHW out."""
    n, c, h, w = x_nchw.shape
    hout, wout = h // 2, w // 2
    # Crop before transposing so the relayout never touches dropped rows/cols.
    x_nchw = x_nchw[:, :, : hout * 2, : wout * 2]
    x_nhwc = jnp.transpose(x_nchw, (0, 2, 3, 1))
    out_nhwc = _maxpool2x2_nhwc(x_nhwc)
    # TODO(synk): if the surrounding model can stay NHWC end-to-end, call
    # downsample_forward_nhwc directly and drop both transposes (~2.5-3x less
    # HBM traffic for this bandwidth-bound op; biggest win on v5e).
    return jnp.transpose(out_nhwc, (0, 3, 1, 2))


def _reference(x_nchw):
    n, c, h, w = x_nchw.shape
    hout, wout = h // 2, w // 2
    xc = x_nchw[:, :, : hout * 2, : wout * 2]
    return xc.reshape(n, c, hout, 2, wout, 2).max(axis=(3, 5))


if __name__ == "__main__":
    key = jax.random.PRNGKey(0)
    n, c, h, w = 2, 4, 16, 16
    x = jax.random.normal(key, (n, c, h, w), dtype=jnp.float32)

    out = jax.block_until_ready(downsample_forward(x))
    ref = _reference(x)
    assert out.shape == (n, c, h // 2, w // 2)
    assert jnp.allclose(out, ref), "NCHW path mismatch vs reference"

    # The NHWC-native fast path (no transposes) must agree as well.
    out_nhwc = jax.block_until_ready(
        downsample_forward_nhwc(jnp.transpose(x, (0, 2, 3, 1))))
    assert jnp.allclose(out_nhwc, jnp.transpose(ref, (0, 2, 3, 1))), \
        "NHWC path mismatch vs reference"

    print("KERNEL_OK")
</pallas_src>

<mosaic_0001>
module attributes {stable_mosaic.version = 11 : i64} {
  func.func @_maxpool2x2_kernel(%arg0: i32, %arg1: memref<16x2x8x8xf32, #tpu.memory_space<vmem>>, %arg2: memref<16x8x4xf32, #tpu.memory_space<vmem>>) attributes {dimension_semantics = [#tpu.dimension_semantics<parallel>], iteration_bounds = array<i64: 1>, scalar_prefetch = 0 : i64, scratch_operands = 0 : i64, tpu.core_type = #tpu.core_type<tc>, window_params = [{transform_indices = @transform_0, window_bounds = array<i64: 16, 2, 8, 8>}, {transform_indices = @transform_1, window_bounds = array<i64: 16, 8, 4>}]} {
    %c0 = arith.constant 0 : index
    %c0_0 = arith.constant 0 : index
    %c0_1 = arith.constant 0 : index
    %c0_2 = arith.constant 0 : index
    %0 = vector.load %arg1[%c0, %c0_0, %c0_1, %c0_2] : memref<16x2x8x8xf32, #tpu.memory_space<vmem>>, vector<16x1x8x8xf32>
    %1 = vector.shape_cast %0 : vector<16x1x8x8xf32> to vector<16x8x8xf32>
    %c0_3 = arith.constant 0 : index
    %c1 = arith.constant 1 : index
    %c0_4 = arith.constant 0 : index
    %c0_5 = arith.constant 0 : index
    %2 = vector.load %arg1[%c0_3, %c1, %c0_4, %c0_5] : memref<16x2x8x8xf32, #tpu.memory_space<vmem>>, vector<16x1x8x8xf32>
    %3 = vector.shape_cast %2 : vector<16x1x8x8xf32> to vector<16x8x8xf32>
    %4 = arith.maximumf %1, %3 : vector<16x8x8xf32>
    %5 = vector.extract_strided_slice %4 {offsets = [0, 0, 0], sizes = [16, 8, 4], strides = [1, 1, 1]} : vector<16x8x8xf32> to vector<16x8x4xf32>
    %6 = vector.extract_strided_slice %4 {offsets = [0, 0, 4], sizes = [16, 8, 4], strides = [1, 1, 1]} : vector<16x8x8xf32> to vector<16x8x4xf32>
    %7 = arith.maximumf %5, %6 : vector<16x8x4xf32>
    %c0_6 = arith.constant 0 : index
    %c0_7 = arith.constant 0 : index
    %c0_8 = arith.constant 0 : index
    %8 = vector.load %arg2[%c0_6, %c0_7, %c0_8] : memref<16x8x4xf32, #tpu.memory_space<vmem>>, vector<16x8x4xf32>
    tpu.vector_store %arg2[%c0_6, %c0_7, %c0_8], %7 {strides = array<i32>} : memref<16x8x4xf32, #tpu.memory_space<vmem>>, vector<16x8x4xf32>,
    return
  }
  func.func @transform_0(%arg0: i32) -> (i32, i32, i32, i32) {
    %c0_i32 = arith.constant 0 : i32
    %c0_i32_0 = arith.constant 0 : i32
    %c0_i32_1 = arith.constant 0 : i32
    %c0_i32_2 = arith.constant 0 : i32
    return %arg0, %c0_i32, %c0_i32_0, %c0_i32_1 : i32, i32, i32, i32
  }
  func.func @transform_1(%arg0: i32) -> (i32, i32, i32) {
    %c0_i32 = arith.constant 0 : i32
    %c0_i32_0 = arith.constant 0 : i32
    %c0_i32_1 = arith.constant 0 : i32
    return %arg0, %c0_i32, %c0_i32_0 : i32, i32, i32
  }
}

</mosaic_0001>

<llo_original>
// kernel: downsample_forward.1
$region0: #{downsample_forward.1}
  #allocation0 [shape = 'u32[]', space=smem, size = 0x4, offset = 0x4, fixed_abs, tag = 'smem constant byte address 0x4 - core index']
  #allocation1 [shape = 'u32[144,128]{1,0:T(1,128)}', space=vmem, size = 0x12000, scoped, tag = 'internal scratch']
  %s0 = inlined_call_operand.vmem [shape: f32[16,2,8,8], index: 0, kind: input, shape index: {}]
  %s1 = inlined_call_operand.vmem [shape: f32[16,8,4], index: 1, kind: output, shape index: {}]
  %s2 = sld [smem:[#allocation0]]
  $region14: #{downsample_forward.1} parent=0
    _
  %s4 = ssub.s32 1, %s2
  %s5 = scalar_select 0, %s4, %s2
  // Predicated region
  $region2: #{downsample_forward.1} parent=0 // pred_check
    _
  $region3: #{downsample_forward.1} parent=0 // pred_check_branch
    %7 = sbr.rel (0) target = $region5
  $region4: #{downsample_forward.1} parent=0 // pred_region
    _
  $region5: #{downsample_forward.1} parent=0 // pred_fallthru
    _
  %v8 = vld [vmem:[%s0] sm:$0xff]
  %v9 = vld [vmem:[%s0 + $0x10] sm:$0xff]
  %v10 = vld [vmem:[%s0 + $0x20] sm:$0xff]
  %v11 = vld [vmem:[%s0 + $0x30] sm:$0xff]
  %v12 = vld [vmem:[%s0 + $0x40] sm:$0xff]
  %v13 = vld [vmem:[%s0 + $0x50] sm:$0xff]
  %v14 = vld [vmem:[%s0 + $0x60] sm:$0xff]
  %v15 = vld [vmem:[%s0 + $0x70] sm:$0xff]
  %v16 = vld [vmem:[%s0 + $0x80] sm:$0xff]
  %v17 = vld [vmem:[%s0 + $0x90] sm:$0xff]
  %v18 = vld [vmem:[%s0 + $0xa0] sm:$0xff]
  %v19 = vld [vmem:[%s0 + $0xb0] sm:$0xff]
  %v20 = vld [vmem:[%s0 + $0xc0] sm:$0xff]
  %v21 = vld [vmem:[%s0 + $0xd0] sm:$0xff]
  %v22 = vld [vmem:[%s0 + $0xe0] sm:$0xff]
  %v23 = vld [vmem:[%s0 + $0xf0] sm:$0xff]
  %s24 = scalar_lea.vmem %s0, 8
  %v25 = vld [vmem:[%s24] sm:$0xff]
  %v26 = vld [vmem:[%s24 + $0x10] sm:$0xff]
  %v27 = vld [vmem:[%s24 + $0x20] sm:$0xff]
  %v28 = vld [vmem:[%s24 + $0x30] sm:$0xff]
  %v29 = vld [vmem:[%s24 + $0x40] sm:$0xff]
  %v30 = vld [vmem:[%s24 + $0x50] sm:$0xff]
  %v31 = vld [vmem:[%s24 + $0x60] sm:$0xff]
  %v32 = vld [vmem:[%s24 + $0x70] sm:$0xff]
  %v33 = vld [vmem:[%s24 + $0x80] sm:$0xff]
  %v34 = vld [vmem:[%s24 + $0x90] sm:$0xff]
  %v35 = vld [vmem:[%s24 + $0xa0] sm:$0xff]
  %v36 = vld [vmem:[%s24 + $0xb0] sm:$0xff]
  %v37 = vld [vmem:[%s24 + $0xc0] sm:$0xff]
  %v38 = vld [vmem:[%s24 + $0xd0] sm:$0xff]
  %v39 = vld [vmem:[%s24 + $0xe0] sm:$0xff]
  %v40 = vld [vmem:[%s24 + $0xf0] sm:$0xff]
  %v41 = vmax.f32 %v8, %v25
  %v42 = vmax.f32 %v9, %v26
  %v43 = vmax.f32 %v10, %v27
  %v44 = vmax.f32 %v11, %v28
  %v45 = vmax.f32 %v12, %v29
  %v46 = vmax.f32 %v13, %v30
  %v47 = vmax.f32 %v14, %v31
  %v48 = vmax.f32 %v15, %v32
  %v49 = vmax.f32 %v16, %v33
  %v50 = vmax.f32 %v17, %v34
  %v51 = vmax.f32 %v18, %v35
  %v52 = vmax.f32 %v19, %v36
  %v53 = vmax.f32 %v20, %v37
  %v54 = vmax.f32 %v21, %v38
  %v55 = vmax.f32 %v22, %v39
  %v56 = vmax.f32 %v23, %v40
  %73 = vrot.lane.b32.xlu0 %v41, 124
  %v74 = vpop.permute.xlu0 %73
  %75 = vrot.lane.b32.xlu0 %v42, 124
  %v76 = vpop.permute.xlu0 %75
  %77 = vrot.lane.b32.xlu0 %v43, 124
  %v78 = vpop.permute.xlu0 %77
  %79 = vrot.lane.b32.xlu0 %v44, 124
  %v80 = vpop.permute.xlu0 %79
  %81 = vrot.lane.b32.xlu0 %v45, 124
  %v82 = vpop.permute.xlu0 %81
  %83 = vrot.lane.b32.xlu0 %v46, 124
  %v84 = vpop.permute.xlu0 %83
  %85 = vrot.lane.b32.xlu0 %v47, 124
  %v86 = vpop.permute.xlu0 %85
  %87 = vrot.lane.b32.xlu0 %v48, 124
  %v88 = vpop.permute.xlu0 %87
  %89 = vrot.lane.b32.xlu0 %v49, 124
  %v90 = vpop.permute.xlu0 %89
  %91 = vrot.lane.b32.xlu0 %v50, 124
  %v92 = vpop.permute.xlu0 %91
  %93 = vrot.lane.b32.xlu0 %v51, 124
  %v94 = vpop.permute.xlu0 %93
  %95 = vrot.lane.b32.xlu0 %v52, 124
  %v96 = vpop.permute.xlu0 %95
  %97 = vrot.lane.b32.xlu0 %v53, 124
  %v98 = vpop.permute.xlu0 %97
  %99 = vrot.lane.b32.xlu0 %v54, 124
  %v100 = vpop.permute.xlu0 %99
  %101 = vrot.lane.b32.xlu0 %v55, 124
  %v102 = vpop.permute.xlu0 %101
  %103 = vrot.lane.b32.xlu0 %v56, 124
  %v104 = vpop.permute.xlu0 %103
  %v121 = vmax.f32 %v41, %v74
  %v122 = vmax.f32 %v42, %v76
  %v123 = vmax.f32 %v43, %v78
  %v124 = vmax.f32 %v44, %v80
  %v125 = vmax.f32 %v45, %v82
  %v126 = vmax.f32 %v46, %v84
  %v127 = vmax.f32 %v47, %v86
  %v128 = vmax.f32 %v48, %v88
  %v129 = vmax.f32 %v49, %v90
  %v130 = vmax.f32 %v50, %v92
  %v131 = vmax.f32 %v51, %v94
  %v132 = vmax.f32 %v52, %v96
  %v133 = vmax.f32 %v53, %v98
  %v134 = vmax.f32 %v54, %v100
  %v135 = vmax.f32 %v55, %v102
  %v136 = vmax.f32 %v56, %v104
  %vm137 = vcmask 31744
  %138 = vst.msk [vmem:[%s1] sm:$0xff] %vm137, %v121
  %139 = vst.msk [vmem:[%s1 + $0x8] sm:$0xff] %vm137, %v122
  %140 = vst.msk [vmem:[%s1 + $0x10] sm:$0xff] %vm137, %v123
  %141 = vst.msk [vmem:[%s1 + $0x18] sm:$0xff] %vm137, %v124
  %142 = vst.msk [vmem:[%s1 + $0x20] sm:$0xff] %vm137, %v125
  %143 = vst.msk [vmem:[%s1 + $0x28] sm:$0xff] %vm137, %v126
  %144 = vst.msk [vmem:[%s1 + $0x30] sm:$0xff] %vm137, %v127
  %145 = vst.msk [vmem:[%s1 + $0x38] sm:$0xff] %vm137, %v128
  %146 = vst.msk [vmem:[%s1 + $0x40] sm:$0xff] %vm137, %v129
  %147 = vst.msk [vmem:[%s1 + $0x48] sm:$0xff] %vm137, %v130
  %148 = vst.msk [vmem:[%s1 + $0x50] sm:$0xff] %vm137, %v131
  %149 = vst.msk [vmem:[%s1 + $0x58] sm:$0xff] %vm137, %v132
  %150 = vst.msk [vmem:[%s1 + $0x60] sm:$0xff] %vm137, %v133
  %151 = vst.msk [vmem:[%s1 + $0x68] sm:$0xff] %vm137, %v134
  %152 = vst.msk [vmem:[%s1 + $0x70] sm:$0xff] %vm137, %v135
  %153 = vst.msk [vmem:[%s1 + $0x78] sm:$0xff] %vm137, %v136
  // Predicated region
  $region6: #{downsample_forward.1} parent=0 // pred_check
    _
  $region7: #{downsample_forward.1} parent=0 // pred_check_branch
    %155 = sbr.rel (0) target = $region9
  $region8: #{downsample_forward.1} parent=0 // pred_region
    _
  $region9: #{downsample_forward.1} parent=0 // pred_fallthru
    _
  // Predicated region
  $region10: #{downsample_forward.1} parent=0 // pred_check
    _
  $region11: #{downsample_forward.1} parent=0 // pred_check_branch
    %157 = sbr.rel (0) target = $region13
  $region12: #{downsample_forward.1} parent=0 // pred_region
    _
  $region13: #{downsample_forward.1} parent=0 // pred_fallthru
    _

</llo_original>
